<compile_context>
chip_gen: v7x
topology: tpu7x:2x2x1
jax: 0.10.0
libtpu: 0.0.40
codegen_flags: <defaults>
</compile_context>

<pallas_src>
import jax
import jax.numpy as jnp
from jax.experimental import pallas as pl
from jax.experimental.pallas import tpu as pltpu

_OUT_FEATURES = 10   # nn.Linear(1, 10)
_OUT_PAD = 16        # pad features 10 -> 16 so the transpose source is 8-aligned


def _round_up(x, m):
    return ((x + m - 1) // m) * m


def _cdiv(a, b):
    return -(-a // b)


def _linear_kernel(x_ref, w_ref, b_ref, o_ref):
    """One batch tile of nn.Linear(1, 10).

    x_ref: (1, TN)       batch on the 128-wide lane axis (dense input DMA)
    w_ref: (16, 1)       weight column, zero-padded 10 -> 16 rows (VMEM-resident)
    b_ref: (16, 1)       bias column, zero-padded (VMEM-resident)
    o_ref: (TN, 10)      output tile already in PyTorch (batch, features) order
    """
    # VPU broadcast FMA: (16, 1) * (1, TN) + (16, 1) -> (16, TN), lane-dense.
    y = w_ref[...] * x_ref[...] + b_ref[...]
    # Fold the layout change into the kernel: one XLU transpose + masked vst
    # instead of a second full HBM pass (XLA transpose) after the kernel.
    y_t = y.T                                   # (TN, 16)
    o_ref[...] = y_t[:, :_OUT_FEATURES].astype(o_ref.dtype)


def generator_forward(x, weight, bias, *, tn=8192, out_dtype=None):
    """x: (N, 1) f32, weight: (10, 1) f32 (PyTorch layout), bias: (10,) f32.

    Returns (N, 10), identical to nn.Linear(1, 10)(x).
    """
    n, in_f = x.shape
    out_f, w_in = weight.shape
    assert in_f == 1 and w_in == 1 and out_f == _OUT_FEATURES, \
        "Generator uses nn.Linear(1, 10)"
    out_dtype = x.dtype if out_dtype is None else out_dtype

    # ---- balanced batch tiling --------------------------------------------
    n128 = _round_up(n, 128)
    # Enough tiles to (a) respect the per-tile cap `tn` and (b) give >=8 grid
    # steps when the batch is large (v7x: 2 TCs x double buffering), without
    # dicing small batches below 512 columns per tile.
    num_tiles = max(_cdiv(n128, max(tn, 128)), min(8, _cdiv(n128, 512)))
    tn_eff = _round_up(_cdiv(n128, num_tiles), 128)
    num_tiles = _cdiv(n128, tn_eff)
    n_pad = num_tiles * tn_eff

    # ---- operand layout ----------------------------------------------------
    # Batch on the lane axis: (N, 1) -> (1, N) is a free row-major reshape;
    # only materialize the zero-pad copy for ragged batches.
    x_lanes = x.reshape(1, n)
    if n_pad != n:
        x_lanes = jnp.pad(x_lanes, ((0, 0), (0, n_pad - n)))

    # Weight / bias as zero-padded columns (resident in VMEM across the grid).
    w_col = jnp.zeros((_OUT_PAD, 1), x.dtype).at[:out_f, 0].set(
        weight[:, 0].astype(x.dtype))
    b_col = jnp.zeros((_OUT_PAD, 1), x.dtype).at[:out_f, 0].set(
        bias.astype(x.dtype))

    out = pl.pallas_call(
        _linear_kernel,
        out_shape=jax.ShapeDtypeStruct((n_pad, out_f), out_dtype),
        grid_spec=pltpu.PrefetchScalarGridSpec(
            num_scalar_prefetch=0,
            grid=(num_tiles,),
            in_specs=[
                pl.BlockSpec((1, tn_eff), lambda i: (0, i)),      # x tile
                pl.BlockSpec((_OUT_PAD, 1), lambda i: (0, 0)),    # weight (resident)
                pl.BlockSpec((_OUT_PAD, 1), lambda i: (0, 0)),    # bias (resident)
            ],
            out_specs=pl.BlockSpec((tn_eff, out_f), lambda i: (i, 0)),
        ),
        compiler_params=pltpu.CompilerParams(
            dimension_semantics=("parallel",),
            vmem_limit_bytes=32 << 20,
        ),
    )(x_lanes, w_col, b_col)

    # Output is already (N, 10); only trim the ragged-batch padding.
    # TODO(synk): rely on Pallas partial-block writes to drop this trim pass
    # for ragged N once validated on all target generations.
    return out if n_pad == n else out[:n]


if __name__ == "__main__":
    key = jax.random.PRNGKey(0)
    k_w, k_b, k_x1, k_x2, k_x3 = jax.random.split(key, 5)

    in_features, out_features = 1, 10
    bound = 1.0 / (in_features ** 0.5)
    weight = jax.random.uniform(k_w, (out_features, in_features),
                                minval=-bound, maxval=bound, dtype=jnp.float32)
    bias = jax.random.uniform(k_b, (out_features,),
                              minval=-bound, maxval=bound, dtype=jnp.float32)

    # Small batch of 8 scalars, shape (8, 1) — like Generator(Input).
    x1 = jax.random.normal(k_x1, (8, in_features), dtype=jnp.float32)
    out1 = jax.block_until_ready(generator_forward(x1, weight, bias))
    ref1 = x1 @ weight.T + bias
    assert out1.shape == (8, out_features)
    assert jnp.allclose(out1, ref1, atol=1e-5, rtol=1e-5)

    # Multi-tile, batch a multiple of 128: exercises grid>1 and the no-pad path.
    x2 = jax.random.normal(k_x2, (1024, in_features), dtype=jnp.float32)
    out2 = jax.block_until_ready(generator_forward(x2, weight, bias, tn=512))
    ref2 = x2 @ weight.T + bias
    assert out2.shape == (1024, out_features)
    assert jnp.allclose(out2, ref2, atol=1e-5, rtol=1e-5)

    # Ragged batch: exercises padding + trailing trim.
    x3 = jax.random.normal(k_x3, (1000, in_features), dtype=jnp.float32)
    out3 = jax.block_until_ready(generator_forward(x3, weight, bias, tn=512))
    ref3 = x3 @ weight.T + bias
    assert out3.shape == (1000, out_features)
    assert jnp.allclose(out3, ref3, atol=1e-5, rtol=1e-5)

    print("KERNEL_OK")
</pallas_src>

<mosaic_0001>
module attributes {stable_mosaic.version = 11 : i64} {
  func.func @_linear_kernel(%arg0: i32, %arg1: memref<1x128xf32, #tpu.memory_space<vmem>>, %arg2: memref<16x1xf32, #tpu.memory_space<vmem>>, %arg3: memref<16x1xf32, #tpu.memory_space<vmem>>, %arg4: memref<128x10xf32, #tpu.memory_space<vmem>>) attributes {dimension_semantics = [#tpu.dimension_semantics<parallel>], iteration_bounds = array<i64: 1>, scalar_prefetch = 0 : i64, scratch_operands = 0 : i64, tpu.core_type = #tpu.core_type<tc>, window_params = [{transform_indices = @transform_0, window_bounds = array<i64: 1, 128>}, {pipeline_mode = #tpu.pipeline_mode<synchronous>, transform_indices = @transform_1, window_bounds = array<i64: 16, 1>}, {pipeline_mode = #tpu.pipeline_mode<synchronous>, transform_indices = @transform_2, window_bounds = array<i64: 16, 1>}, {transform_indices = @transform_3, window_bounds = array<i64: 128, 10>}]} {
    %c0 = arith.constant 0 : index
    %c0_0 = arith.constant 0 : index
    %0 = vector.load %arg2[%c0, %c0_0] : memref<16x1xf32, #tpu.memory_space<vmem>>, vector<16x1xf32>
    %c0_1 = arith.constant 0 : index
    %c0_2 = arith.constant 0 : index
    %1 = vector.load %arg1[%c0_1, %c0_2] : memref<1x128xf32, #tpu.memory_space<vmem>>, vector<1x128xf32>
    %2 = vector.broadcast %0 : vector<16x1xf32> to vector<16x128xf32>
    %3 = vector.broadcast %1 : vector<1x128xf32> to vector<16x128xf32>
    %4 = arith.mulf %2, %3 : vector<16x128xf32>
    %c0_3 = arith.constant 0 : index
    %c0_4 = arith.constant 0 : index
    %5 = vector.load %arg3[%c0_3, %c0_4] : memref<16x1xf32, #tpu.memory_space<vmem>>, vector<16x1xf32>
    %6 = vector.broadcast %5 : vector<16x1xf32> to vector<16x128xf32>
    %7 = arith.addf %4, %6 : vector<16x128xf32>
    %8 = tpu.transpose %7, [1, 0] : vector<16x128xf32> -> vector<128x16xf32>
    %9 = vector.extract_strided_slice %8 {offsets = [0, 0], sizes = [128, 10], strides = [1, 1]} : vector<128x16xf32> to vector<128x10xf32>
    %c0_5 = arith.constant 0 : index
    %c0_6 = arith.constant 0 : index
    %10 = vector.load %arg4[%c0_5, %c0_6] : memref<128x10xf32, #tpu.memory_space<vmem>>, vector<128x10xf32>
    tpu.vector_store %arg4[%c0_5, %c0_6], %9 {strides = array<i32>} : memref<128x10xf32, #tpu.memory_space<vmem>>, vector<128x10xf32>,
    return
  }
  func.func @transform_0(%arg0: i32) -> (i32, i32) {
    %c0_i32 = arith.constant 0 : i32
    %c0_i32_0 = arith.constant 0 : i32
    return %c0_i32, %arg0 : i32, i32
  }
  func.func @transform_1(%arg0: i32) -> (i32, i32) {
    %c0_i32 = arith.constant 0 : i32
    %c0_i32_0 = arith.constant 0 : i32
    %c0_i32_1 = arith.constant 0 : i32
    return %c0_i32, %c0_i32_0 : i32, i32
  }
  func.func @transform_2(%arg0: i32) -> (i32, i32) {
    %c0_i32 = arith.constant 0 : i32
    %c0_i32_0 = arith.constant 0 : i32
    %c0_i32_1 = arith.constant 0 : i32
    return %c0_i32, %c0_i32_0 : i32, i32
  }
  func.func @transform_3(%arg0: i32) -> (i32, i32) {
    %c0_i32 = arith.constant 0 : i32
    %c0_i32_0 = arith.constant 0 : i32
    return %arg0, %c0_i32 : i32, i32
  }
}

</mosaic_0001>

<llo_original>
// kernel: tpu_custom_call.1
$region0: #{tpu_custom_call.1}
  #allocation0 [shape = 'u32[]', space=smem, size = 0x4, offset = 0x4, fixed_abs, tag = 'smem constant byte address 0x4 - core index']
  #allocation1 [shape = 'u32[144,128]{1,0:T(1,128)}', space=vmem, size = 0x12000, scoped, tag = 'internal scratch']
  %s0 = inlined_call_operand.vmem [shape: f32[1,128], index: 0, kind: input, shape index: {}]
  %s1 = inlined_call_operand.vmem [shape: f32[16,1], index: 1, kind: input, shape index: {}]
  %s2 = inlined_call_operand.vmem [shape: f32[16,1], index: 2, kind: input, shape index: {}]
  %s3 = inlined_call_operand.vmem [shape: f32[128,10], index: 3, kind: output, shape index: {}]
  %s4 = sld [smem:[#allocation0]]
  $region22: #{tpu_custom_call.1} parent=0
    _
  %s6 = ssub.s32 1, %s4
  %s7 = scalar_select 0, %s6, %s4
  // Predicated region
  $region2: #{tpu_custom_call.1} parent=0 // pred_check
    _
  $region3: #{tpu_custom_call.1} parent=0 // pred_check_branch
    %9 = sbr.rel (0) target = $region5
  $region4: #{tpu_custom_call.1} parent=0 // pred_region
    _
  $region5: #{tpu_custom_call.1} parent=0 // pred_fallthru
    _
  // Predicated region
  $region6: #{tpu_custom_call.1} parent=0 // pred_check
    _
  $region7: #{tpu_custom_call.1} parent=0 // pred_check_branch
    %11 = sbr.rel (0) target = $region9
  $region8: #{tpu_custom_call.1} parent=0 // pred_region
    _
  $region9: #{tpu_custom_call.1} parent=0 // pred_fallthru
    _
  // Predicated region
  $region10: #{tpu_custom_call.1} parent=0 // pred_check
    _
  $region11: #{tpu_custom_call.1} parent=0 // pred_check_branch
    %13 = sbr.rel (0) target = $region13
  $region12: #{tpu_custom_call.1} parent=0 // pred_region
    _
  $region13: #{tpu_custom_call.1} parent=0 // pred_fallthru
    _
  %v14 = vld [vmem:[%s1] sm:$0xff]
  %v15 = vld [vmem:[%s1 + $0x8] sm:$0xff]
  %v16 = vld [vmem:[%s0] sm:$0x1]
  %18 = vset.pattern.permute.xlu0 0
  %19 = vperm.xlu0 %18, %v14
  %v20 = vpop.permute.xlu0 %19
  %23 = vset.pattern.permute.xlu0 0
  %24 = vperm.xlu0 %23, %v15
  %v25 = vpop.permute.xlu0 %24
  %v28 = vlaneseq
  %v29 = vshrl.u32 %v28, 7
  %v30 = vsub.s32 0, %v29
  %v31 = vrot.slane %v16, %v30
  %v33 = vmul.f32 %v20, %v31
  %v34 = vmul.f32 %v25, %v31
  %v35 = vld [vmem:[%s2] sm:$0xff]
  %v36 = vld [vmem:[%s2 + $0x8] sm:$0xff]
  %38 = vset.pattern.permute.xlu0 0
  %39 = vperm.xlu0 %38, %v35
  %v40 = vpop.permute.xlu0 %39
  %43 = vset.pattern.permute.xlu0 0
  %44 = vperm.xlu0 %43, %v36
  %v45 = vpop.permute.xlu0 %44
  %v47 = vadd.f32 %v33, %v40
  %v48 = vadd.f32 %v34, %v45
  %49 = vxpose.xlu0.b32.start [1/16] %v47, 128
  %50 = vxpose.xlu0.b32.cont [2/16] %v48, 128
  %51 = vxpose.xlu0.b32.cont [3/16] 0.0, 128
  %52 = vxpose.xlu0.b32.cont [4/16] 0.0, 128
  %53 = vxpose.xlu0.b32.cont [5/16] 0.0, 128
  %54 = vxpose.xlu0.b32.cont [6/16] 0.0, 128
  %55 = vxpose.xlu0.b32.cont [7/16] 0.0, 128
  %56 = vxpose.xlu0.b32.cont [8/16] 0.0, 128
  %57 = vxpose.xlu0.b32.cont [9/16] 0.0, 128
  %58 = vxpose.xlu0.b32.cont [10/16] 0.0, 128
  %59 = vxpose.xlu0.b32.cont [11/16] 0.0, 128
  %60 = vxpose.xlu0.b32.cont [12/16] 0.0, 128
  %61 = vxpose.xlu0.b32.cont [13/16] 0.0, 128
  %62 = vxpose.xlu0.b32.cont [14/16] 0.0, 128
  %63 = vxpose.xlu0.b32.cont [15/16] 0.0, 128
  %64 = vxpose.xlu0.b32.end [16/16] 0.0, 128
  %v65 = vpop.trf.xlu0
  %v66 = vpop.trf.xlu0
  %v67 = vpop.trf.xlu0
  %v68 = vpop.trf.xlu0
  %v69 = vpop.trf.xlu0
  %v70 = vpop.trf.xlu0
  %v71 = vpop.trf.xlu0
  %v72 = vpop.trf.xlu0
  %v73 = vpop.trf.xlu0
  %v74 = vpop.trf.xlu0
  %v75 = vpop.trf.xlu0
  %v76 = vpop.trf.xlu0
  %v77 = vpop.trf.xlu0
  %v78 = vpop.trf.xlu0
  %v79 = vpop.trf.xlu0
  %v80 = vpop.trf.xlu0
  %vm81 = vcmask 80896
  %82 = vst.msk [vmem:[%s3] sm:$0xff] %vm81, %v65
  %83 = vst.msk [vmem:[%s3 + $0x8] sm:$0xff] %vm81, %v66
  %84 = vst.msk [vmem:[%s3 + $0x10] sm:$0xff] %vm81, %v67
  %85 = vst.msk [vmem:[%s3 + $0x18] sm:$0xff] %vm81, %v68
  %86 = vst.msk [vmem:[%s3 + $0x20] sm:$0xff] %vm81, %v69
  %87 = vst.msk [vmem:[%s3 + $0x28] sm:$0xff] %vm81, %v70
  %88 = vst.msk [vmem:[%s3 + $0x30] sm:$0xff] %vm81, %v71
  %89 = vst.msk [vmem:[%s3 + $0x38] sm:$0xff] %vm81, %v72
  %90 = vst.msk [vmem:[%s3 + $0x40] sm:$0xff] %vm81, %v73
  %91 = vst.msk [vmem:[%s3 + $0x48] sm:$0xff] %vm81, %v74
  %92 = vst.msk [vmem:[%s3 + $0x50] sm:$0xff] %vm81, %v75
  %93 = vst.msk [vmem:[%s3 + $0x58] sm:$0xff] %vm81, %v76
  %94 = vst.msk [vmem:[%s3 + $0x60] sm:$0xff] %vm81, %v77
  %95 = vst.msk [vmem:[%s3 + $0x68] sm:$0xff] %vm81, %v78
  %96 = vst.msk [vmem:[%s3 + $0x70] sm:$0xff] %vm81, %v79
  %97 = vst.msk [vmem:[%s3 + $0x78] sm:$0xff] %vm81, %v80
  // Predicated region
  $region14: #{tpu_custom_call.1} parent=0 // pred_check
    _
  $region15: #{tpu_custom_call.1} parent=0 // pred_check_branch
    %99 = sbr.rel (0) target = $region17
  $region16: #{tpu_custom_call.1} parent=0 // pred_region
    _
  $region17: #{tpu_custom_call.1} parent=0 // pred_fallthru
    _
  // Predicated region
  $region18: #{tpu_custom_call.1} parent=0 // pred_check
    _
  $region19: #{tpu_custom_call.1} parent=0 // pred_check_branch
    %101 = sbr.rel (0) target = $region21
  $region20: #{tpu_custom_call.1} parent=0 // pred_region
    _
  $region21: #{tpu_custom_call.1} parent=0 // pred_fallthru
    _

</llo_original>
